<compile_context>
chip_gen: v5e
topology: v5e:2x2
jax: 0.10.0
libtpu: 0.0.40
codegen_flags: <defaults>
</compile_context>

<pallas_src>
import functools

import jax
import jax.numpy as jnp
from jax.experimental import pallas as pl
from jax.experimental.pallas import tpu as pltpu


def _round_up(n, m):
    return ((n + m - 1) // m) * m


def highway_kernel(x_ref, w_ref, b_ref, o_ref):
    """One batch tile of highway encoding.

    x_ref: (tb, Hp)   f32 input tile (kept f32 for the skip path)
    w_ref: (Hp, 2Hp)  fused [Wn^T | Wg^T] (bf16 or f32; resident, 1-buffered)
    b_ref: (1, 2Hp)   f32 fused [bn | bg]; padded gate columns hold -1e30
    o_ref: (tb, Hp)   output tile
    """
    x = x_ref[...]
    h = x.shape[-1]

    # One fused MXU matmul for both branches, f32 accumulation.
    logits = jnp.dot(x.astype(w_ref.dtype), w_ref[...],
                     preferred_element_type=jnp.float32) + b_ref[...]

    normal = jnp.maximum(logits[:, :h], 0.0)          # relu branch
    g = logits[:, h:]                                 # gate logits
    m = jnp.max(g, axis=-1, keepdims=True)
    e = jnp.exp(g - m)
    denom = jnp.sum(e, axis=-1, keepdims=True)
    # Exact reciprocal: only (tb, 1) values, essentially free, and it keeps
    # gate rows summing to 1 (the approx EUP reciprocal has ~1e-3 rel error,
    # which broke the tight f32 correctness check).
    gate = e * (1.0 / denom)

    # normal*gate + (1-gate)*x == gate*(normal - x) + x   (fewer VPU ops)
    o_ref[...] = (gate * (normal - x) + x).astype(o_ref.dtype)


def prepare_highway_params(w_normal, b_normal, w_gate, b_gate,
                           *, matmul_dtype=jnp.bfloat16):
    """One-time parameter prep OUTSIDE the hot path.

    PyTorch nn.Linear weights are (out, in); the kernel computes x @ W, so we
    transpose once, pad H up to a multiple of 128 (lane-dense split/stores)
    and concatenate both branches into one (Hp, 2*Hp) operand.
    """
    h = w_normal.shape[0]
    hp = _round_up(h, 128)
    wn_t = jnp.zeros((hp, hp), jnp.float32).at[:h, :h].set(w_normal.T)
    wg_t = jnp.zeros((hp, hp), jnp.float32).at[:h, :h].set(w_gate.T)
    bn = jnp.zeros((hp,), jnp.float32).at[:h].set(b_normal)
    # Padded gate columns get a huge negative bias -> exp underflows to 0, so
    # softmax over Hp columns == softmax over the real H columns.
    bg = jnp.full((hp,), -1e30, jnp.float32).at[:h].set(b_gate)
    w_cat = jnp.concatenate([wn_t, wg_t], axis=1).astype(matmul_dtype)
    b_cat = jnp.concatenate([bn, bg]).reshape(1, 2 * hp).astype(jnp.float32)
    return w_cat, b_cat


def _pick_tile_b(batch, hp, tile_b):
    if tile_b is None:
        # Size the tile by bytes (~2 MiB of f32 x per step), rounded to 128
        # rows, clamped to [256, 2048]; small tiles leave the ~0.35us per-step
        # overhead exposed in the memory-bound regime (H up to ~1.3k).
        tb = _round_up(max(1, (2 << 20) // (4 * hp)), 128)
        tb = min(max(tb, 256), 2048)
    else:
        tb = max(8, _round_up(tile_b, 8))
    tb = min(tb, _round_up(batch, 8))             # never bigger than needed
    # Keep both v7x TensorCores busy: need >= 2 grid steps when possible.
    if pl.cdiv(batch, tb) < 2 and batch > 8:
        tb = max(8, _round_up(pl.cdiv(batch, 2), 8))
    return tb


@functools.partial(jax.jit, static_argnames=("tile_b", "out_dtype"))
def highway_encoding(x, w_cat, b_cat, *, tile_b=None, out_dtype=None):
    """x: (B, H) f32. w_cat: (Hp, 2*Hp) fused weights. b_cat: (1, 2*Hp) bias."""
    B, H = x.shape
    Hp = w_cat.shape[0]
    assert w_cat.shape == (Hp, 2 * Hp)
    assert b_cat.shape == (1, 2 * Hp)
    assert Hp >= H

    # Only pad the hidden dim (rare: H not a multiple of 128). Ragged B is
    # handled by cdiv grid + dropped OOB writes -- no extra HBM pass over x.
    x_in = x if Hp == H else jnp.pad(x, ((0, 0), (0, Hp - H)))
    out_dtype = x.dtype if out_dtype is None else out_dtype

    tb = _pick_tile_b(B, Hp, tile_b)
    grid = (pl.cdiv(B, tb),)

    # VMEM budget: single-buffered weights/bias + double-buffered x/out tiles
    # + (tb, 2Hp) f32 logits/exp/gate temporaries + headroom. Clamped to 85%
    # of physical VMEM (v7x has only 64 MiB per TensorCore).
    try:
        vmem_cap = int(pltpu.get_tpu_info().vmem_capacity_bytes)
    except Exception:
        vmem_cap = 64 << 20
    w_bytes = w_cat.size * jnp.dtype(w_cat.dtype).itemsize
    b_bytes = b_cat.size * jnp.dtype(b_cat.dtype).itemsize
    tile_io = 2 * tb * Hp * (jnp.dtype(x_in.dtype).itemsize
                             + jnp.dtype(out_dtype).itemsize)
    tmp_bytes = 3 * tb * 2 * Hp * 4
    vmem_need = w_bytes + b_bytes + tile_io + tmp_bytes + (2 << 20)
    vmem_limit = int(min(int(0.85 * vmem_cap), max(32 << 20, vmem_need)))

    out = pl.pallas_call(
        highway_kernel,
        out_shape=jax.ShapeDtypeStruct((B, Hp), out_dtype),
        grid_spec=pltpu.PrefetchScalarGridSpec(
            num_scalar_prefetch=0,
            grid=grid,
            in_specs=[
                pl.BlockSpec((tb, Hp), lambda i: (i, 0)),            # x tile
                pl.BlockSpec((Hp, 2 * Hp), lambda i: (0, 0),
                             pipeline_mode=pl.Buffered(1)),          # weights
                pl.BlockSpec((1, 2 * Hp), lambda i: (0, 0),
                             pipeline_mode=pl.Buffered(1)),          # bias
            ],
            out_specs=pl.BlockSpec((tb, Hp), lambda i: (i, 0)),
        ),
        compiler_params=pltpu.CompilerParams(
            dimension_semantics=("parallel",),   # shard steps across v7x TCs
            vmem_limit_bytes=vmem_limit,
        ),
    )(x_in, w_cat, b_cat)
    return out if Hp == H else out[:, :H]


def highway_reference(x, w_normal, b_normal, w_gate, b_gate):
    hi = jax.lax.Precision.HIGHEST
    normal = jax.nn.relu(jnp.dot(x, w_normal.T, precision=hi) + b_normal)
    gate = jax.nn.softmax(jnp.dot(x, w_gate.T, precision=hi) + b_gate, axis=-1)
    return normal * gate + (1.0 - gate) * x


if __name__ == "__main__":
    B, H = 52, 128           # ragged batch (exercises the cdiv edge block)
    gate_bias = -2.0

    key = jax.random.PRNGKey(0)
    kx, kwn, kbn, kwg = jax.random.split(key, 4)

    # PyTorch nn.Linear default init: U(-1/sqrt(H), 1/sqrt(H))
    bound = 1.0 / float(jnp.sqrt(jnp.float32(H)))
    x = jax.random.normal(kx, (B, H), dtype=jnp.float32)
    w_normal = jax.random.uniform(kwn, (H, H), jnp.float32, -bound, bound)
    b_normal = jax.random.uniform(kbn, (H,), jnp.float32, -bound, bound)
    w_gate = jax.random.uniform(kwg, (H, H), jnp.float32, -bound, bound)
    b_gate = jnp.full((H,), gate_bias, dtype=jnp.float32)  # bias.fill_(-2)

    ref = highway_reference(x, w_normal, b_normal, w_gate, b_gate)

    # f32 matmul path (tighter check; tolerance leaves room for MXU vs XLA
    # reduction-order / precision differences on hardware).
    w32, b32 = prepare_highway_params(w_normal, b_normal, w_gate, b_gate,
                                      matmul_dtype=jnp.float32)
    out32 = jax.block_until_ready(highway_encoding(x, w32, b32))
    assert out32.shape == (B, H)
    assert jnp.allclose(out32, ref, atol=2e-3, rtol=2e-3), "f32 path mismatch"

    # bf16 matmul operands with f32 accumulation (performance configuration).
    wbf, bbf = prepare_highway_params(w_normal, b_normal, w_gate, b_gate,
                                      matmul_dtype=jnp.bfloat16)
    outbf = jax.block_until_ready(highway_encoding(x, wbf, bbf))
    assert outbf.shape == (B, H)
    assert jnp.allclose(outbf, ref, atol=5e-2, rtol=5e-2), "bf16 path mismatch"

    # Non-lane-aligned hidden size (H=32 padded to 128 inside prepare).
    Hs = 32
    xs = jax.random.normal(kx, (16, Hs), dtype=jnp.float32)
    bnd = 1.0 / float(jnp.sqrt(jnp.float32(Hs)))
    wns = jax.random.uniform(kwn, (Hs, Hs), jnp.float32, -bnd, bnd)
    bns = jax.random.uniform(kbn, (Hs,), jnp.float32, -bnd, bnd)
    wgs = jax.random.uniform(kwg, (Hs, Hs), jnp.float32, -bnd, bnd)
    bgs = jnp.full((Hs,), gate_bias, dtype=jnp.float32)
    refs = highway_reference(xs, wns, bns, wgs, bgs)
    ws, bs = prepare_highway_params(wns, bns, wgs, bgs, matmul_dtype=jnp.float32)
    outs = jax.block_until_ready(highway_encoding(xs, ws, bs))
    assert outs.shape == (16, Hs)
    assert jnp.allclose(outs, refs, atol=2e-3, rtol=2e-3), "padded-H mismatch"

    print("KERNEL_OK")
</pallas_src>

<mosaic_0001>
module attributes {stable_mosaic.version = 11 : i64} {
  func.func @highway_kernel(%arg0: i32, %arg1: memref<32x128xf32, #tpu.memory_space<vmem>>, %arg2: memref<128x256xf32, #tpu.memory_space<vmem>>, %arg3: memref<1x256xf32, #tpu.memory_space<vmem>>, %arg4: memref<32x128xf32, #tpu.memory_space<vmem>>) attributes {dimension_semantics = [#tpu.dimension_semantics<parallel>], iteration_bounds = array<i64: 2>, scalar_prefetch = 0 : i64, scratch_operands = 0 : i64, tpu.core_type = #tpu.core_type<tc>, window_params = [{transform_indices = @transform_0, window_bounds = array<i64: 32, 128>}, {pipeline_mode = #tpu.pipeline_mode<synchronous>, transform_indices = @transform_1, window_bounds = array<i64: 128, 256>}, {pipeline_mode = #tpu.pipeline_mode<synchronous>, transform_indices = @transform_2, window_bounds = array<i64: 1, 256>}, {transform_indices = @transform_3, window_bounds = array<i64: 32, 128>}]} {
    %c0 = arith.constant 0 : index
    %c0_0 = arith.constant 0 : index
    %0 = vector.load %arg1[%c0, %c0_0] : memref<32x128xf32, #tpu.memory_space<vmem>>, vector<32x128xf32>
    %c0_1 = arith.constant 0 : index
    %c0_2 = arith.constant 0 : index
    %1 = vector.load %arg2[%c0_1, %c0_2] : memref<128x256xf32, #tpu.memory_space<vmem>>, vector<128x256xf32>
    %cst = arith.constant dense<0.000000e+00> : vector<32x256xf32>
    %2 = tpu.matmul %0, %1, %cst {dimension_numbers = #tpu.dot_dimension_numbers<[1], [0], [0], [1], [0, 0, 1, 1], [], []>} : vector<32x128xf32>, vector<128x256xf32>, vector<32x256xf32> -> vector<32x256xf32>
    %c0_3 = arith.constant 0 : index
    %c0_4 = arith.constant 0 : index
    %3 = vector.load %arg3[%c0_3, %c0_4] : memref<1x256xf32, #tpu.memory_space<vmem>>, vector<1x256xf32>
    %4 = vector.broadcast %3 : vector<1x256xf32> to vector<32x256xf32>
    %5 = arith.addf %2, %4 : vector<32x256xf32>
    %6 = vector.extract_strided_slice %5 {offsets = [0, 0], sizes = [32, 128], strides = [1, 1]} : vector<32x256xf32> to vector<32x128xf32>
    %cst_5 = arith.constant 0.000000e+00 : f32
    %7 = vector.broadcast %cst_5 : f32 to vector<32x128xf32>
    %8 = arith.maximumf %6, %7 : vector<32x128xf32>
    %9 = vector.extract_strided_slice %5 {offsets = [0, 128], sizes = [32, 128], strides = [1, 1]} : vector<32x256xf32> to vector<32x128xf32>
    %cst_6 = arith.constant dense<0xFF800000> : vector<32xf32>
    %10 = vector.multi_reduction <maximumf>, %9, %cst_6 [1] : vector<32x128xf32> to vector<32xf32>
    %11 = vector.shape_cast %10 : vector<32xf32> to vector<32x1xf32>
    %12 = vector.broadcast %11 : vector<32x1xf32> to vector<32x128xf32>
    %13 = arith.subf %9, %12 : vector<32x128xf32>
    %14 = math.exp %13 : vector<32x128xf32>
    %cst_7 = arith.constant dense<0.000000e+00> : vector<32xf32>
    %15 = vector.multi_reduction <add>, %14, %cst_7 [1] : vector<32x128xf32> to vector<32xf32>
    %16 = vector.shape_cast %15 : vector<32xf32> to vector<32x1xf32>
    %cst_8 = arith.constant 1.000000e+00 : f32
    %17 = vector.broadcast %cst_8 : f32 to vector<32x1xf32>
    %18 = arith.divf %17, %16 : vector<32x1xf32>
    %19 = vector.broadcast %18 : vector<32x1xf32> to vector<32x128xf32>
    %20 = arith.mulf %14, %19 : vector<32x128xf32>
    %21 = arith.subf %8, %0 : vector<32x128xf32>
    %22 = arith.mulf %20, %21 : vector<32x128xf32>
    %23 = arith.addf %22, %0 : vector<32x128xf32>
    %c0_9 = arith.constant 0 : index
    %c0_10 = arith.constant 0 : index
    %24 = vector.load %arg4[%c0_9, %c0_10] : memref<32x128xf32, #tpu.memory_space<vmem>>, vector<32x128xf32>
    tpu.vector_store %arg4[%c0_9, %c0_10], %23 {strides = array<i32>} : memref<32x128xf32, #tpu.memory_space<vmem>>, vector<32x128xf32>,
    return
  }
  func.func @transform_0(%arg0: i32) -> (i32, i32) {
    %c0_i32 = arith.constant 0 : i32
    %c0_i32_0 = arith.constant 0 : i32
    return %arg0, %c0_i32 : i32, i32
  }
  func.func @transform_1(%arg0: i32) -> (i32, i32) {
    %c0_i32 = arith.constant 0 : i32
    %c0_i32_0 = arith.constant 0 : i32
    %c0_i32_1 = arith.constant 0 : i32
    return %c0_i32, %c0_i32_0 : i32, i32
  }
  func.func @transform_2(%arg0: i32) -> (i32, i32) {
    %c0_i32 = arith.constant 0 : i32
    %c0_i32_0 = arith.constant 0 : i32
    %c0_i32_1 = arith.constant 0 : i32
    return %c0_i32, %c0_i32_0 : i32, i32
  }
  func.func @transform_3(%arg0: i32) -> (i32, i32) {
    %c0_i32 = arith.constant 0 : i32
    %c0_i32_0 = arith.constant 0 : i32
    return %arg0, %c0_i32 : i32, i32
  }
}

</mosaic_0001>

<llo_original>
// kernel: highway_encoding.1
$region0: #{highway_encoding.1}
  #allocation0 [shape = 'u32[]', space=smem, size = 0x4, offset = 0x4, fixed_abs, tag = 'smem constant byte address 0x4 - core index']
  #allocation1 [shape = 'u32[72,128]{1,0:T(1,128)}', space=vmem, size = 0x9000, scoped, tag = 'internal scratch']
  %s0 = inlined_call_operand.hbm [shape: f32[52,128], index: 0, kind: input, shape index: {}]
  %s1 = inlined_call_operand.hbm [shape: f32[128,256], index: 1, kind: input, shape index: {}]
  %s2 = inlined_call_operand.hbm [shape: f32[1,256], index: 2, kind: input, shape index: {}]
  %s3 = inlined_call_operand.hbm [shape: f32[52,128], index: 3, kind: output, shape index: {}]
  %s4 = sld [smem:[#allocation0]]
  $region57: #{highway_encoding.1} parent=0
    _
  %s6 = ssub.s32 1, %s4
  %s7 = scalar_select 0, %s6, %s4
  $region1: #{highway_encoding.1} parent=0
    #allocation2 [shape = 'u8[32768]{0}', space=vmem, size = 0x8000, scoped, tag = 'input window, operand 0']
    #allocation3 [shape = 's32[2]{0}', space=sflag, size = 0x8, scoped, tag = 'scoped memory for highway_encoding.1']
    #allocation4 [shape = 's32[2]{0}', space=sflag, size = 0x8, scoped, tag = 'scoped memory for highway_encoding.1']
    #allocation5 [shape = 'u8[131072]{0}', space=vmem, size = 0x20000, scoped, tag = 'input window, operand 1, single buffered']
    #allocation6 [shape = 's32[1]{0}', space=sflag, size = 0x4, scoped, tag = 'scoped memory for highway_encoding.1']
    #allocation7 [shape = 'u8[1024]{0}', space=vmem, size = 0x400, scoped, tag = 'input window, operand 2, single buffered']
    #allocation8 [shape = 'u8[32768]{0}', space=vmem, size = 0x8000, scoped, tag = 'output window, operand 0']
    %8 = vsyncpa [#allocation3], 0
    %s9 = scalar_lea.sflag [#allocation3], 1
    %10 = vsyncpa %s9, 0
    %11 = vsyncpa [#allocation6], 0
    %12 = vsyncpa [#allocation4], 0
    %s13 = scalar_lea.sflag [#allocation4], 1
    %14 = vsyncpa %s13, 0
    loop: start=0, step=1, limit=4
    $region2: #{highway_encoding.1} parent=1 // loop_pre_header
      _
    $region3: #{highway_encoding.1} parent=1 // loop_header
      %s16 = sphi 0, %s20
      %p17 = scmp.ge.s32.totalorder %s16, 4
      %s26 = sphi 0, %s28
      %s29 = sphi 0, %s26
      %s30 = sphi 0, %s29
      %s46 = sphi 0, %s30
      %s50 = sphi 0, %s50
      %s52 = sphi 0, %s50
      %s53 = sphi 0, %s52
      %s67 = sphi 0, %s53
      %s71 = sphi 0, %s71
      %s73 = sphi 0, %s71
      %s74 = sphi 0, %s73
      %s88 = sphi 0, %s74
      %s94 = sphi 0, %s96
      %s97 = sphi 0, %s94
      %s98 = sphi 0, %s97
      %s114 = sphi 0, %s98
    $region4: #{highway_encoding.1} parent=1 // loop_header_branch
      %19 = sbr.rel (%p17) target = $region8
    $region5: #{highway_encoding.1} parent=1 // loop_body
      %s21 = ssub.s32 %s16, 1
      %s22 = ssub.s32 %s16, 2
      %s23 = sadd.s32 %s16, 1
      %s24 = ssub.s32 %s16, %s23
      %p25 = scmp.eq.s32.totalorder %s24, 0
      %s27 = sadd.s32 %s26, 1
      %s28 = scalar_select %p25, %s26, %s27
      %p31 = pneg %p25
      %p32 = scmp.eq.s32.totalorder %s16, 1
      %p33 = por %p31, %p32
      %p34 = scmp.ne.s32.totalorder %s26, %s29
      %p35 = scmp.eq.s32.totalorder %s16, 0
      %p36 = por %p34, %p35
      %p37 = scmp.ne.s32.totalorder %s26, %s29
      %p38 = scmp.eq.s32.totalorder %s21, 1
      %p39 = por %p37, %p38
      %p40 = scmp.ne.s32.totalorder %s29, %s30
      %p41 = scmp.eq.s32.totalorder %s21, 0
      %p42 = por %p40, %p41
      %p43 = scmp.ne.s32.totalorder %s29, %s30
      %p44 = scmp.eq.s32.totalorder %s22, 1
      %p45 = por %p43, %p44
      %p47 = scmp.ne.s32.totalorder %s30, %s46
      %p48 = scmp.eq.s32.totalorder %s22, 0
      %p49 = por %p47, %p48
      %s51 = sadd.s32 %s50, 1
      %p54 = scmp.eq.s32.totalorder %s16, 1
      %p55 = scmp.ne.s32.totalorder %s50, %s52
      %p56 = scmp.eq.s32.totalorder %s16, 0
      %p57 = por %p55, %p56
      %p58 = scmp.ne.s32.totalorder %s50, %s52
      %p59 = scmp.eq.s32.totalorder %s21, 1
      %p60 = por %p58, %p59
      %p61 = scmp.ne.s32.totalorder %s52, %s53
      %p62 = scmp.eq.s32.totalorder %s21, 0
      %p63 = por %p61, %p62
      %p64 = scmp.ne.s32.totalorder %s52, %s53
      %p65 = scmp.eq.s32.totalorder %s22, 1
      %p66 = por %p64, %p65
      %p68 = scmp.ne.s32.totalorder %s53, %s67
      %p69 = scmp.eq.s32.totalorder %s22, 0
      %p70 = por %p68, %p69
      %s72 = sadd.s32 %s71, 1
      %p75 = scmp.eq.s32.totalorder %s16, 1
      %p76 = scmp.ne.s32.totalorder %s71, %s73
      %p77 = scmp.eq.s32.totalorder %s16, 0
      %p78 = por %p76, %p77
      %p79 = scmp.ne.s32.totalorder %s71, %s73
      %p80 = scmp.eq.s32.totalorder %s21, 1
      %p81 = por %p79, %p80
      %p82 = scmp.ne.s32.totalorder %s73, %s74
      %p83 = scmp.eq.s32.totalorder %s21, 0
      %p84 = por %p82, %p83
      %p85 = scmp.ne.s32.totalorder %s73, %s74
      %p86 = scmp.eq.s32.totalorder %s22, 1
      %p87 = por %p85, %p86
      %p89 = scmp.ne.s32.totalorder %s74, %s88
      %p90 = scmp.eq.s32.totalorder %s22, 0
      %p91 = por %p89, %p90
      %s92 = ssub.s32 %s16, %s23
      %p93 = scmp.eq.s32.totalorder %s92, 0
      %s95 = sadd.s32 %s94, 1
      %s96 = scalar_select %p93, %s94, %s95
      %p99 = pneg %p93
      %p100 = scmp.eq.s32.totalorder %s16, 1
      %p101 = por %p99, %p100
      %p102 = scmp.ne.s32.totalorder %s94, %s97
      %p103 = scmp.eq.s32.totalorder %s16, 0
      %p104 = por %p102, %p103
      %p105 = scmp.ne.s32.totalorder %s94, %s97
      %p106 = scmp.eq.s32.totalorder %s21, 1
      %p107 = por %p105, %p106
      %p108 = scmp.ne.s32.totalorder %s97, %s98
      %p109 = scmp.eq.s32.totalorder %s21, 0
      %p110 = por %p108, %p109
      %p111 = scmp.ne.s32.totalorder %s97, %s98
      %p112 = scmp.eq.s32.totalorder %s22, 1
      %p113 = por %p111, %p112
      %p115 = scmp.ne.s32.totalorder %s98, %s114
      %p116 = scmp.eq.s32.totalorder %s22, 0
      %p117 = por %p115, %p116
      %p118 = scmp.le.s32.totalorder 1, %s16
      %p119 = scmp.lt.s32.totalorder %s16, 3
      %p120 = pnand %p118, %p119
      %p121 = pneg %p120
      // Predicated region
      $region9: #{highway_encoding.1} parent=5 // pred_check
        _
      $region10: #{highway_encoding.1} parent=5 // pred_check_branch
        %123 = sbr.rel (%p120) target = $region12
      $region11: #{highway_encoding.1} parent=5 // pred_region
        %s124 = ssub.s32 %s16, 1
        // Predicated region
        $region13: #{highway_encoding.1} parent=11 // pred_check
          %p125 = pneg %p63
        $region14: #{highway_encoding.1} parent=11 // pred_check_branch
          %127 = sbr.rel (%p125) target = $region16
        $region15: #{highway_encoding.1} parent=11 // pred_region
          %129 = vsyncadd [#allocation6], 0
          %s130 = sshll.u32 %s1, 4
          %s131 = int_to_ptr.hbm [resolvable:$true] %s130
          %s132 = sshll.u32 [#allocation5], 4
          %s133 = int_to_ptr.vmem [resolvable:$true] %s132
          %138 = dma.hbm_to_vmem [thread:$0]  %s131, 4096, %s133, [#allocation6], 256, 256, 16
        $region16: #{highway_encoding.1} parent=11 // pred_fallthru
          _
        // Predicated region
        $region17: #{highway_encoding.1} parent=11 // pred_check
          %p139 = pneg %p84
        $region18: #{highway_encoding.1} parent=11 // pred_check_branch
          %141 = sbr.rel (%p139) target = $region20
        $region19: #{highway_encoding.1} parent=11 // pred_region
          %143 = vsyncadd [#allocation6], 0
          %s145 = sshll.u32 %s2, 4
          %s146 = int_to_ptr.hbm [resolvable:$true] %s145
          %s147 = sshll.u32 [#allocation7], 4
          %s148 = int_to_ptr.vmem [resolvable:$true] %s147
          %150 = dma.hbm_to_vmem [thread:$0]  %s146, 32, %s148, [#allocation6]
        $region20: #{highway_encoding.1} parent=11 // pred_fallthru
          _
      $region12: #{highway_encoding.1} parent=5 // pred_fallthru
        _
      %p151 = scmp.lt.s32.totalorder %s16, 2
      // Predicated region
      $region21: #{highway_encoding.1} parent=5 // pred_check
        %p152 = pneg %p151
      $region22: #{highway_encoding.1} parent=5 // pred_check_branch
        %154 = sbr.rel (%p152) target = $region24
      $region23: #{highway_encoding.1} parent=5 // pred_region
        // Predicated region
        $region25: #{highway_encoding.1} parent=23 // pred_check
          %p155 = pneg %p36
        $region26: #{highway_encoding.1} parent=23 // pred_check_branch
          %157 = sbr.rel (%p155) target = $region28
        $region27: #{highway_encoding.1} parent=23 // pred_region
          %s158 = sand.u32 %s26, 1
          %s159 = scalar_lea.sflag [#allocation3], %s158
          %s160 = sand.u32 %s26, 1
          %s161 = smul.addr %s160, 32
          %s162 = scalar_lea.vmem [#allocation2], %s161
          %s163 = smul.u32 4, %s16
          %s164 = ssub.s32 7, %s163
          %p165 = scmp.lt.s32.totalorder %s164, 4
          %s166 = scalar_select %p165, %s164, 4
          %s167 = smul.u32 8, %s166
          %s168 = ssub.s32 32, %s167
          %s169 = sshll.u32 %s168, 4
          %170 = vsyncadd %s159, %s169
          %p171 = scmp.ne.s32.totalorder 0, %s167
          %s172 = smul.addr %s163, 8
          %s173 = scalar_lea.hbm %s0, %s172
          %s174 = smul.u32 8, %s166
          %s175 = sshll.u32 %s173, 4
          %s176 = int_to_ptr.hbm [resolvable:$true] %s175
          %s177 = sshll.u32 %s162, 4
          %s178 = int_to_ptr.vmem [resolvable:$true] %s177
          %s179 = sshll.u32 %s174, 4
          %183 = dma.hbm_to_vmem [thread:$0]  (%p171), %s176, %s179, %s178, %s159, 128, 128, 8
        $region28: #{highway_encoding.1} parent=23 // pred_fallthru
          _
      $region24: #{highway_encoding.1} parent=5 // pred_fallthru
        _
      %p184 = scmp.le.s32.totalorder 1, %s16
      %p185 = scmp.lt.s32.totalorder %s16, 3
      %p186 = pnand %p184, %p185
      %p187 = pneg %p186
      // Predicated region
      $region29: #{highway_encoding.1} parent=5 // pred_check
        _
      $region30: #{highway_encoding.1} parent=5 // pred_check_branch
        %189 = sbr.rel (%p186) target = $region32
      $region31: #{highway_encoding.1} parent=5 // pred_region
        %s190 = ssub.s32 %s16, 1
        %s191 = sand.u32 %s29, 1
        %s192 = scalar_lea.sflag [#allocation3], %s191
        %s193 = sand.u32 %s29, 1
        %s194 = smul.addr %s193, 32
        %s195 = scalar_lea.vmem [#allocation2], %s194
        // Predicated region
        $region33: #{highway_encoding.1} parent=31 // pred_check
          %p196 = pneg %p42
        $region34: #{highway_encoding.1} parent=31 // pred_check_branch
          %198 = sbr.rel (%p196) target = $region36
        $region35: #{highway_encoding.1} parent=31 // pred_region
          %200 = dma.done %s192, 512
        $region36: #{highway_encoding.1} parent=31 // pred_fallthru
          _
        // Predicated region
        $region37: #{highway_encoding.1} parent=31 // pred_check
          %p201 = pneg %p63
        $region38: #{highway_encoding.1} parent=31 // pred_check_branch
          %203 = sbr.rel (%p201) target = $region40
        $region39: #{highway_encoding.1} parent=31 // pred_region
          %205 = dma.done [#allocation6], 4096
        $region40: #{highway_encoding.1} parent=31 // pred_fallthru
          _
        // Predicated region
        $region41: #{highway_encoding.1} parent=31 // pred_check
          %p206 = pneg %p84
        $region42: #{highway_encoding.1} parent=31 // pred_check_branch
          %208 = sbr.rel (%p206) target = $region44
        $region43: #{highway_encoding.1} parent=31 // pred_region
          %210 = dma.done [#allocation6], 32
        $region44: #{highway_encoding.1} parent=31 // pred_fallthru
          _
        %s211 = sand.u32 %s29, 1
        %s212 = scalar_lea.sflag [#allocation3], %s211
        %s213 = sand.u32 %s29, 1
        %s214 = smul.addr %s213, 32
        %s215 = scalar_lea.vmem [#allocation2], %s214
        %p216 = pneg %p42
        %p217 = pneg %p39
        %p218 = pneg %p63
        %p219 = pneg %p60
        %p220 = pneg %p84
        %p221 = pneg %p81
        %p222 = pneg %p110
        %p223 = pneg %p107
        %s224 = sand.u32 %s97, 1
        %s225 = scalar_lea.sflag [#allocation4], %s224
        %s226 = sand.u32 %s97, 1
        %s227 = smul.addr %s226, 32
        %s228 = scalar_lea.vmem [#allocation8], %s227
        %s229 = smul.u32 4, %s21
        %s230 = ssub.s32 7, %s229
        %p231 = scmp.lt.s32.totalorder %s230, 4
        %s232 = scalar_select %p231, %s230, 4
        %s233 = smul.u32 8, %s232
        %s234 = smul.u32 4, %s21
        %s235 = ssub.s32 7, %s234
        %p236 = scmp.lt.s32.totalorder %s235, 4
        %s237 = scalar_select %p236, %s235, 4
        %s238 = smul.u32 8, %s237
        %v239 = vld [vmem:[%s195] sm:$0xff]
        %v240 = vld [vmem:[%s195 + $0x8] sm:$0xff]
        %v241 = vld [vmem:[%s195 + $0x10] sm:$0xff]
        %v242 = vld [vmem:[%s195 + $0x18] sm:$0xff]
        %v243 = vld [vmem:[#allocation5] sm:$0xff]
        %v244 = vld [vmem:[#allocation5 + $0x8] sm:$0xff]
        %v245 = vld [vmem:[#allocation5 + $0x10] sm:$0xff]
        %v246 = vld [vmem:[#allocation5 + $0x18] sm:$0xff]
        %v247 = vld [vmem:[#allocation5 + $0x20] sm:$0xff]
        %v248 = vld [vmem:[#allocation5 + $0x28] sm:$0xff]
        %v249 = vld [vmem:[#allocation5 + $0x30] sm:$0xff]
        %v250 = vld [vmem:[#allocation5 + $0x38] sm:$0xff]
        %v251 = vld [vmem:[#allocation5 + $0x40] sm:$0xff]
        %v252 = vld [vmem:[#allocation5 + $0x48] sm:$0xff]
        %v253 = vld [vmem:[#allocation5 + $0x50] sm:$0xff]
        %v254 = vld [vmem:[#allocation5 + $0x58] sm:$0xff]
        %v255 = vld [vmem:[#allocation5 + $0x60] sm:$0xff]
        %v256 = vld [vmem:[#allocation5 + $0x68] sm:$0xff]
        %v257 = vld [vmem:[#allocation5 + $0x70] sm:$0xff]
        %v258 = vld [vmem:[#allocation5 + $0x78] sm:$0xff]
        %v259 = vld [vmem:[#allocation5 + $0x80] sm:$0xff]
        %v260 = vld [vmem:[#allocation5 + $0x88] sm:$0xff]
        %v261 = vld [vmem:[#allocation5 + $0x90] sm:$0xff]
        %v262 = vld [vmem:[#allocation5 + $0x98] sm:$0xff]
        %v263 = vld [vmem:[#allocation5 + $0xa0] sm:$0xff]
        %v264 = vld [vmem:[#allocation5 + $0xa8] sm:$0xff]
        %v265 = vld [vmem:[#allocation5 + $0xb0] sm:$0xff]
        %v266 = vld [vmem:[#allocation5 + $0xb8] sm:$0xff]
        %v267 = vld [vmem:[#allocation5 + $0xc0] sm:$0xff]
        %v268 = vld [vmem:[#allocation5 + $0xc8] sm:$0xff]
        %v269 = vld [vmem:[#allocation5 + $0xd0] sm:$0xff]
        %v270 = vld [vmem:[#allocation5 + $0xd8] sm:$0xff]
        %v271 = vld [vmem:[#allocation5 + $0xe0] sm:$0xff]
        %v272 = vld [vmem:[#allocation5 + $0xe8] sm:$0xff]
        %v273 = vld [vmem:[#allocation5 + $0xf0] sm:$0xff]
        %v274 = vld [vmem:[#allocation5 + $0xf8] sm:$0xff]
        %v275 = vld [vmem:[#allocation7] sm:$0x3]
        %v277 = vperm.slane %v275, 0
        %v278 = vperm.slane %v275, 1
        %281 = vmatpush.msra.mxu0 %v273
        %282 = vmatpush.msra.mxu0 %v271
        %283 = vmatpush.msra.mxu0 %v269
        %284 = vmatpush.msra.mxu0 %v267
        %285 = vmatpush.msra.mxu0 %v265
        %286 = vmatpush.msra.mxu0 %v263
        %287 = vmatpush.msra.mxu0 %v261
        %288 = vmatpush.msra.mxu0 %v259
        %289 = vmatpush.msra.mxu0 %v257
        %290 = vmatpush.msra.mxu0 %v255
        %291 = vmatpush.msra.mxu0 %v253
        %292 = vmatpush.msra.mxu0 %v251
        %293 = vmatpush.msra.mxu0 %v249
        %294 = vmatpush.msra.mxu0 %v247
        %295 = vmatpush.msra.mxu0 %v245
        %296 = vmatpush.msra.mxu0 %v243
        %297 = vmatmul.f32.gmra.mxu0 %v239
        %v298 = vpop.f32.mrf.mxu0
        %v299 = vadd.f32 %v277, %v298
        %300 = vmatmul.f32.gmra.mxu0 %v240
        %v301 = vpop.f32.mrf.mxu0
        %v302 = vadd.f32 %v277, %v301
        %303 = vmatmul.f32.gmra.mxu0 %v241
        %v304 = vpop.f32.mrf.mxu0
        %v305 = vadd.f32 %v277, %v304
        %306 = vmatmul.f32.gmra.mxu0 %v242
        %v307 = vpop.f32.mrf.mxu0
        %v308 = vadd.f32 %v277, %v307
        %309 = vdwg.mxu0
        %310 = vmatpush.msra.mxu0 %v274
        %311 = vmatpush.msra.mxu0 %v272
        %312 = vmatpush.msra.mxu0 %v270
        %313 = vmatpush.msra.mxu0 %v268
        %314 = vmatpush.msra.mxu0 %v266
        %315 = vmatpush.msra.mxu0 %v264
        %316 = vmatpush.msra.mxu0 %v262
        %317 = vmatpush.msra.mxu0 %v260
        %318 = vmatpush.msra.mxu0 %v258
        %319 = vmatpush.msra.mxu0 %v256
        %320 = vmatpush.msra.mxu0 %v254
        %321 = vmatpush.msra.mxu0 %v252
        %322 = vmatpush.msra.mxu0 %v250
        %323 = vmatpush.msra.mxu0 %v248
        %324 = vmatpush.msra.mxu0 %v246
        %325 = vmatpush.msra.mxu0 %v244
        %326 = vmatmul.f32.gmra.mxu0 %v239
        %v327 = vpop.f32.mrf.mxu0
        %v328 = vadd.f32 %v278, %v327
        %329 = vmatmul.f32.gmra.mxu0 %v240
        %v330 = vpop.f32.mrf.mxu0
        %v331 = vadd.f32 %v278, %v330
        %332 = vmatmul.f32.gmra.mxu0 %v241
        %v333 = vpop.f32.mrf.mxu0
        %v334 = vadd.f32 %v278, %v333
        %335 = vmatmul.f32.gmra.mxu0 %v242
        %v336 = vpop.f32.mrf.mxu0
        %v337 = vadd.f32 %v278, %v336
        %338 = vdwg.mxu0
        %v339 = vmax.f32 %v299, 0.0
        %v340 = vmax.f32 %v302, 0.0
        %v341 = vmax.f32 %v305, 0.0
        %v342 = vmax.f32 %v308, 0.0
        %343 = vmax.xlane.f32.xlu0 %v328
        %v344 = vpop.xlane.xlu0 %343
        %345 = vmax.xlane.f32.xlu0 %v331
        %v346 = vpop.xlane.xlu0 %345
        %347 = vmax.xlane.f32.xlu0 %v334
        %v348 = vpop.xlane.xlu0 %347
        %349 = vmax.xlane.f32.xlu0 %v337
        %v350 = vpop.xlane.xlu0 %349
        %v351 = vsub.f32 %v328, %v344
        %v352 = vsub.f32 %v331, %v346
        %v353 = vsub.f32 %v334, %v348
        %v354 = vsub.f32 %v337, %v350
        %v355 = vmul.f32 %v351, 1.442695
        %v356 = vpow.pop %v355
        %v357 = vmul.f32 %v352, 1.442695
        %v358 = vpow.pop %v357
        %v359 = vmul.f32 %v353, 1.442695
        %v360 = vpow.pop %v359
        %v361 = vmul.f32 %v354, 1.442695
        %v362 = vpow.pop %v361
        %363 = vadd.xlane.f32.xlu0 %v356
        %v364 = vpop.xlane.xlu0 %363
        %365 = vadd.xlane.f32.xlu0 %v358
        %v366 = vpop.xlane.xlu0 %365
        %367 = vadd.xlane.f32.xlu0 %v360
        %v368 = vpop.xlane.xlu0 %367
        %369 = vadd.xlane.f32.xlu0 %v362
        %v370 = vpop.xlane.xlu0 %369
        %v371 = vrcp.pop %v364
        %v372 = vmul.f32 %v364, %v371
        %v373 = vsub.f32 1.0, %v372
        %v374 = vmul.f32 %v371, %v373
        %v375 = vadd.f32 %v371, %v374
        %vm376 = vweird.f32 %v364
        %vm377 = vweird.f32 %v371
        %vm378 = vmor %vm376, %vm377
        %v379 = vsel %vm378, %v371, %v375
        %v380 = vand.u32 2147483647, %v364
        %vm381 = vcmp.eq.f32.partialorder %v380, 8.507059e+37
        %v382 = vand.u32 %v364, 2147483648
        %v383 = vor.u32 1.1754944e-38, %v382
        %v384 = vsel %vm381, %v383, %v379
        %v385 = vmul.f32 1.0, %v384
        %v386 = vrcp.pop %v366
        %v387 = vmul.f32 %v366, %v386
        %v388 = vsub.f32 1.0, %v387
        %v389 = vmul.f32 %v386, %v388
        %v390 = vadd.f32 %v386, %v389
        %vm391 = vweird.f32 %v366
        %vm392 = vweird.f32 %v386
        %vm393 = vmor %vm391, %vm392
        %v394 = vsel %vm393, %v386, %v390
        %v395 = vand.u32 2147483647, %v366
        %vm396 = vcmp.eq.f32.partialorder %v395, 8.507059e+37
        %v397 = vand.u32 %v366, 2147483648
        %v398 = vor.u32 1.1754944e-38, %v397
        %v399 = vsel %vm396, %v398, %v394
        %v400 = vmul.f32 1.0, %v399
        %v401 = vrcp.pop %v368
        %v402 = vmul.f32 %v368, %v401
        %v403 = vsub.f32 1.0, %v402
        %v404 = vmul.f32 %v401, %v403
        %v405 = vadd.f32 %v401, %v404
        %vm406 = vweird.f32 %v368
        %vm407 = vweird.f32 %v401
        %vm408 = vmor %vm406, %vm407
        %v409 = vsel %vm408, %v401, %v405
        %v410 = vand.u32 2147483647, %v368
        %vm411 = vcmp.eq.f32.partialorder %v410, 8.507059e+37
        %v412 = vand.u32 %v368, 2147483648
        %v413 = vor.u32 1.1754944e-38, %v412
        %v414 = vsel %vm411, %v413, %v409
        %v415 = vmul.f32 1.0, %v414
        %v416 = vrcp.pop %v370
        %v417 = vmul.f32 %v370, %v416
        %v418 = vsub.f32 1.0, %v417
        %v419 = vmul.f32 %v416, %v418
        %v420 = vadd.f32 %v416, %v419
        %vm421 = vweird.f32 %v370
        %vm422 = vweird.f32 %v416
        %vm423 = vmor %vm421, %vm422
        %v424 = vsel %vm423, %v416, %v420
        %v425 = vand.u32 2147483647, %v370
        %vm426 = vcmp.eq.f32.partialorder %v425, 8.507059e+37
        %v427 = vand.u32 %v370, 2147483648
        %v428 = vor.u32 1.1754944e-38, %v427
        %v429 = vsel %vm426, %v428, %v424
        %v430 = vmul.f32 1.0, %v429
        %v431 = vmul.f32 %v356, %v385
        %v432 = vmul.f32 %v358, %v400
        %v433 = vmul.f32 %v360, %v415
        %v434 = vmul.f32 %v362, %v430
        %v435 = vsub.f32 %v339, %v239
        %v436 = vsub.f32 %v340, %v240
        %v437 = vsub.f32 %v341, %v241
        %v438 = vsub.f32 %v342, %v242
        %v439 = vmul.f32 %v431, %v435
        %v440 = vmul.f32 %v432, %v436
        %v441 = vmul.f32 %v433, %v437
        %v442 = vmul.f32 %v434, %v438
        %v443 = vadd.f32 %v439, %v239
        %v444 = vadd.f32 %v440, %v240
        %v445 = vadd.f32 %v441, %v241
        %v446 = vadd.f32 %v442, %v242
        %447 = vst [vmem:[%s228] sm:$0xff] %v443
        %448 = vst [vmem:[%s228 + $0x8] sm:$0xff] %v444
        %449 = vst [vmem:[%s228 + $0x10] sm:$0xff] %v445
        %450 = vst [vmem:[%s228 + $0x18] sm:$0xff] %v446
        %s451 = sand.u32 %s97, 1
        %s452 = scalar_lea.sflag [#allocation4], %s451
        %s453 = sand.u32 %s97, 1
        %s454 = smul.addr %s453, 32
        %s455 = scalar_lea.vmem [#allocation8], %s454
        // Predicated region
        $region45: #{highway_encoding.1} parent=31 // pred_check
          %p456 = pneg %p107
        $region46: #{highway_encoding.1} parent=31 // pred_check_branch
          %458 = sbr.rel (%p456) target = $region48
        $region47: #{highway_encoding.1} parent=31 // pred_region
          %s459 = smul.u32 4, %s21
          %s460 = ssub.s32 7, %s459
          %p461 = scmp.lt.s32.totalorder %s460, 4
          %s462 = scalar_select %p461, %s460, 4
          %s463 = smul.u32 8, %s462
          %s464 = ssub.s32 32, %s463
          %s465 = sshll.u32 %s464, 4
          %466 = vsyncadd %s452, %s465
          %p467 = scmp.ne.s32.totalorder 0, %s463
          %s468 = smul.addr %s459, 8
          %s469 = scalar_lea.hbm %s3, %s468
          %s470 = smul.u32 8, %s462
          %s471 = sshll.u32 %s455, 4
          %s472 = int_to_ptr.vmem [resolvable:$true] %s471
          %s473 = sshll.u32 %s469, 4
          %s474 = int_to_ptr.hbm [resolvable:$true] %s473
          %s475 = sshll.u32 %s470, 4
          %479 = dma.vmem_to_hbm [thread:$0]  (%p467), %s472, %s475, %s474, %s452, 128, 128, 8
        $region48: #{highway_encoding.1} parent=31 // pred_fallthru
          _
      $region32: #{highway_encoding.1} parent=5 // pred_fallthru
        _
      %p480 = scmp.le.s32.totalorder 2, %s16
      // Predicated region
      $region49: #{highway_encoding.1} parent=5 // pred_check
        %p481 = pneg %p480
      $region50: #{highway_encoding.1} parent=5 // pred_check_branch
        %483 = sbr.rel (%p481) target = $region52
      $region51: #{highway_encoding.1} parent=5 // pred_region
        %s484 = ssub.s32 %s16, 2
        // Predicated region
        $region53: #{highway_encoding.1} parent=51 // pred_check
          %p485 = pneg %p113
        $region54: #{highway_encoding.1} parent=51 // pred_check_branch
          %487 = sbr.rel (%p485) target = $region56
        $region55: #{highway_encoding.1} parent=51 // pred_region
          %s488 = sand.u32 %s98, 1
          %s489 = scalar_lea.sflag [#allocation4], %s488
          %s490 = sand.u32 %s98, 1
          %s491 = smul.addr %s490, 32
          %s492 = scalar_lea.vmem [#allocation8], %s491
          %494 = dma.done %s489, 512
        $region56: #{highway_encoding.1} parent=51 // pred_fallthru
          _
      $region52: #{highway_encoding.1} parent=5 // pred_fallthru
        _
    $region6: #{highway_encoding.1} parent=1 // loop_footer
      %s20 = sadd.s32 1, %s16
    $region7: #{highway_encoding.1} parent=1 // loop_footer_branch
      %15 = sbr.rel target = $region3
    $region8: #{highway_encoding.1} parent=1 // loop_exit
      _
    %495 = vsyncpa [#allocation3], 1
    %s496 = scalar_lea.sflag [#allocation3], 1
    %497 = vsyncpa %s496, 1
    %498 = vsyncpa [#allocation6], 1
    %499 = vsyncpa [#allocation4], 1
    %s500 = scalar_lea.sflag [#allocation4], 1
    %501 = vsyncpa %s500, 1

</llo_original>
